<compile_context>
chip_gen: v7x
topology: tpu7x:2x2x1
jax: 0.10.0
libtpu: 0.0.40
codegen_flags: <defaults>
</compile_context>

<pallas_src>
import functools

import jax
import jax.numpy as jnp
from jax import lax
from jax.experimental import pallas as pl
from jax.experimental.pallas import tpu as pltpu


def _round_up(x, m):
    return (x + m - 1) // m * m


def _bert_embeddings_kernel(ids_ref, pos_ref,              # SMEM scalar prefetch
                            tt_ref,                        # (TM, 1) int32 VMEM
                            wemb_hbm, pemb_hbm,            # HBM refs (pl.ANY)
                            temb_ref, gamma_ref, beta_ref, # small VMEM residents
                            out_ref,                       # (TM, H) f32
                            wbuf, pbuf, sems,              # VMEM scratch + DMA sems
                            *, eps):
    tm, hdim = out_ref.shape
    vocab = wemb_hbm.shape[0]
    max_pos = pemb_hbm.shape[0]
    n_types = temb_ref.shape[0]

    base = pl.program_id(0) * tm

    # ---- DMA row gather: word + position embedding rows (HBM -> VMEM) ------
    # Issue all copies for this tile, then drain the semaphores.  Indices are
    # clamped so padded / out-of-range ids never produce an OOB HBM read.
    @pl.loop(0, tm)
    def _(t):
        wid = jnp.clip(ids_ref[base + t], 0, vocab - 1)
        pid = jnp.clip(pos_ref[base + t], 0, max_pos - 1)
        pltpu.make_async_copy(wemb_hbm.at[wid], wbuf.at[t], sems.at[0]).start()
        pltpu.make_async_copy(pemb_hbm.at[pid], pbuf.at[t], sems.at[1]).start()

    @pl.loop(0, tm)
    def _(t):
        pltpu.make_async_copy(wemb_hbm.at[0], wbuf.at[t], sems.at[0]).wait()
        pltpu.make_async_copy(pemb_hbm.at[0], pbuf.at[t], sems.at[1]).wait()

    # ---- Token-type embedding: VPU select over the tiny type vocab ---------
    tt = tt_ref[...]                                      # (TM, 1) int32
    tte = jnp.broadcast_to(temb_ref[0, :][None, :], (tm, hdim))
    for t_idx in range(1, n_types):                        # static tiny loop (T=2)
        tte = jnp.where(tt == t_idx, temb_ref[t_idx, :][None, :], tte)

    # TODO(synk): sigma != 0 Gaussian-noise path (sigma * randn_like) would use
    # pltpu.prng_seed + pltpu.stateful_normal; sigma defaults to 0.0 -> no-op.
    x = wbuf[...] + pbuf[...] + tte                        # (TM, H) f32

    # ---- LayerNorm over hidden dim (biased variance, matches nn.LayerNorm) -
    mean = jnp.mean(x, axis=-1, keepdims=True)
    centered = x - mean
    var = jnp.mean(centered * centered, axis=-1, keepdims=True)
    y = centered * jax.lax.rsqrt(var + eps)
    # Dropout: identity in eval mode.
    out_ref[...] = y * gamma_ref[...] + beta_ref[...]


def bert_embeddings(input_ids, token_type_ids, position_ids,
                    word_emb, pos_emb, type_emb, gamma, beta,
                    *, eps=1e-12, tm=128):
    B, S = input_ids.shape
    V, H = word_emb.shape
    N = B * S

    tm = min(tm, _round_up(N, 8))          # token tile (multiple of 8 sublanes)
    n_pad = _round_up(N, tm)
    grid = n_pad // tm

    def pad_flat(x):
        x = x.reshape(N).astype(jnp.int32)
        return jnp.pad(x, (0, n_pad - N))

    ids_flat = pad_flat(input_ids)          # -> SMEM (scalar prefetch)
    pos_flat = pad_flat(position_ids)       # -> SMEM (scalar prefetch)
    tt_2d = pad_flat(token_type_ids).reshape(n_pad, 1)

    gamma2d = gamma.reshape(1, H).astype(jnp.float32)
    beta2d = beta.reshape(1, H).astype(jnp.float32)

    kernel = functools.partial(_bert_embeddings_kernel, eps=eps)

    grid_spec = pltpu.PrefetchScalarGridSpec(
        num_scalar_prefetch=2,
        grid=(grid,),
        in_specs=[
            pl.BlockSpec((tm, 1), lambda i, ids, pos: (i, 0)),        # token-type ids
            pl.BlockSpec(memory_space=pl.ANY),                        # word table (HBM)
            pl.BlockSpec(memory_space=pl.ANY),                        # pos table (HBM)
            pl.BlockSpec(type_emb.shape, lambda i, ids, pos: (0, 0)), # type table
            pl.BlockSpec((1, H), lambda i, ids, pos: (0, 0)),         # gamma
            pl.BlockSpec((1, H), lambda i, ids, pos: (0, 0)),         # beta
        ],
        out_specs=pl.BlockSpec((tm, H), lambda i, ids, pos: (i, 0)),
        scratch_shapes=[
            pltpu.VMEM((tm, H), jnp.float32),     # gathered word rows
            pltpu.VMEM((tm, H), jnp.float32),     # gathered position rows
            pltpu.SemaphoreType.DMA((2,)),
        ],
    )

    out_flat = pl.pallas_call(
        kernel,
        out_shape=jax.ShapeDtypeStruct((n_pad, H), jnp.float32),
        grid_spec=grid_spec,
        compiler_params=pltpu.CompilerParams(
            dimension_semantics=("parallel",)),
    )(ids_flat, pos_flat, tt_2d,
      word_emb.astype(jnp.float32), pos_emb.astype(jnp.float32),
      type_emb.astype(jnp.float32), gamma2d, beta2d)

    return out_flat[:N].reshape(B, S, H)


def _reference(input_ids, token_type_ids, position_ids,
               word_emb, pos_emb, type_emb, gamma, beta, eps):
    x = (jnp.take(word_emb, input_ids, axis=0)
         + jnp.take(pos_emb, position_ids, axis=0)
         + jnp.take(type_emb, token_type_ids, axis=0))
    mean = jnp.mean(x, axis=-1, keepdims=True)
    var = jnp.mean((x - mean) ** 2, axis=-1, keepdims=True)
    return (x - mean) * jax.lax.rsqrt(var + eps) * gamma + beta


if __name__ == "__main__":
    # Small synthetic BERT config (lane-friendly hidden size)
    vocab_size = 64
    hidden_size = 128
    max_position_embeddings = 32
    type_vocab_size = 2
    pad_token_id = 0
    layer_norm_eps = 1e-12

    batch, seq = 2, 8

    key = jax.random.PRNGKey(0)
    k_w, k_p, k_t, k_g, k_b, k_ids, k_tt = jax.random.split(key, 7)

    word_emb = jax.random.normal(k_w, (vocab_size, hidden_size), jnp.float32) * 0.02
    # padding_idx row is initialized to zeros in nn.Embedding
    word_emb = word_emb.at[pad_token_id].set(0.0)
    pos_emb = jax.random.normal(
        k_p, (max_position_embeddings, hidden_size), jnp.float32) * 0.02
    type_emb = jax.random.normal(
        k_t, (type_vocab_size, hidden_size), jnp.float32) * 0.02
    gamma = 1.0 + 0.1 * jax.random.normal(k_g, (hidden_size,), jnp.float32)
    beta = 0.1 * jax.random.normal(k_b, (hidden_size,), jnp.float32)

    input_ids = jax.random.randint(k_ids, (batch, seq), 0, vocab_size, jnp.int32)
    token_type_ids = jax.random.randint(k_tt, (batch, seq), 0, type_vocab_size,
                                        jnp.int32)
    position_ids = jnp.broadcast_to(
        jnp.arange(seq, dtype=jnp.int32)[None, :], (batch, seq))

    out = bert_embeddings(input_ids, token_type_ids, position_ids,
                          word_emb, pos_emb, type_emb, gamma, beta,
                          eps=layer_norm_eps)
    out = jax.block_until_ready(out)

    ref = _reference(input_ids, token_type_ids, position_ids,
                     word_emb, pos_emb, type_emb, gamma, beta, layer_norm_eps)
    assert out.shape == (batch, seq, hidden_size)
    assert jnp.allclose(out, ref, atol=1e-4, rtol=1e-4), "mismatch vs reference"

    print("KERNEL_OK")
</pallas_src>

<mosaic_0001>
module attributes {stable_mosaic.version = 11 : i64} {
  func.func @_bert_embeddings_kernel(%arg0: i32, %arg1: memref<16xi32, #tpu.memory_space<smem>>, %arg2: memref<16xi32, #tpu.memory_space<smem>>, %arg3: memref<16x1xi32, #tpu.memory_space<vmem>>, %arg4: memref<64x128xf32, #tpu.memory_space<any>>, %arg5: memref<32x128xf32, #tpu.memory_space<any>>, %arg6: memref<2x128xf32, #tpu.memory_space<vmem>>, %arg7: memref<1x128xf32, #tpu.memory_space<vmem>>, %arg8: memref<1x128xf32, #tpu.memory_space<vmem>>, %arg9: memref<16x128xf32, #tpu.memory_space<vmem>>, %arg10: memref<16x128xf32, #tpu.memory_space<vmem>>, %arg11: memref<16x128xf32, #tpu.memory_space<vmem>>, %arg12: memref<2x!tpu.dma_semaphore, #tpu.memory_space<semaphore_mem>>) attributes {dimension_semantics = [#tpu.dimension_semantics<parallel>], iteration_bounds = array<i64: 1>, scalar_prefetch = 2 : i64, scratch_operands = 3 : i64, tpu.core_type = #tpu.core_type<tc>, window_params = [{transform_indices = @transform_0, window_bounds = array<i64: 16, 1>}, {}, {}, {pipeline_mode = #tpu.pipeline_mode<synchronous>, transform_indices = @transform_3, window_bounds = array<i64: 2, 128>}, {pipeline_mode = #tpu.pipeline_mode<synchronous>, transform_indices = @transform_4, window_bounds = array<i64: 1, 128>}, {pipeline_mode = #tpu.pipeline_mode<synchronous>, transform_indices = @transform_5, window_bounds = array<i64: 1, 128>}, {transform_indices = @transform_6, window_bounds = array<i64: 16, 128>}]} {
    %c16_i32 = arith.constant 16 : i32
    %0 = arith.muli %arg0, %c16_i32 : i32
    %c0_i32 = arith.constant 0 : i32
    %c16_i32_0 = arith.constant 16 : i32
    %1 = arith.addi %c0_i32, %c16_i32_0 : i32
    %c1_i32 = arith.constant 1 : i32
    scf.for %arg13 = %c0_i32 to %1 step %c1_i32  : i32 {
      %c1_i32_25 = arith.constant 1 : i32
      %46 = arith.muli %arg13, %c1_i32_25 : i32
      %c0_i32_26 = arith.constant 0 : i32
      %47 = arith.addi %c0_i32_26, %46 : i32
      %48 = arith.addi %0, %47 : i32
      %49 = arith.index_cast %48 : i32 to index
      %50 = memref.load %arg1[%49] : memref<16xi32, #tpu.memory_space<smem>>
      %c0_i32_27 = arith.constant 0 : i32
      %c63_i32 = arith.constant 63 : i32
      %51 = arith.maxsi %c0_i32_27, %50 : i32
      %52 = arith.minsi %c63_i32, %51 : i32
      %53 = arith.addi %0, %47 : i32
      %54 = arith.index_cast %53 : i32 to index
      %55 = memref.load %arg2[%54] : memref<16xi32, #tpu.memory_space<smem>>
      %c0_i32_28 = arith.constant 0 : i32
      %c31_i32 = arith.constant 31 : i32
      %56 = arith.maxsi %c0_i32_28, %55 : i32
      %57 = arith.minsi %c31_i32, %56 : i32
      %c0_i32_29 = arith.constant 0 : i32
      %c0_i32_30 = arith.constant 0 : i32
      %58 = tpu.memref_slice %arg4[%52, %c0_i32_30] : memref<64x128xf32, #tpu.memory_space<any>> -> memref<1x128xf32, #tpu.memory_space<any>>
      %59 = tpu.memref_squeeze %58 : memref<1x128xf32, #tpu.memory_space<any>> -> memref<128xf32, #tpu.memory_space<any>>
      %c0_i32_31 = arith.constant 0 : i32
      %60 = tpu.memref_slice %arg10[%47, %c0_i32_31] : memref<16x128xf32, #tpu.memory_space<vmem>> -> memref<1x128xf32, #tpu.memory_space<vmem>>
      %61 = tpu.memref_squeeze %60 : memref<1x128xf32, #tpu.memory_space<vmem>> -> memref<128xf32, #tpu.memory_space<vmem>>
      %62 = tpu.memref_slice %arg12[%c0_i32_29] : memref<2x!tpu.dma_semaphore, #tpu.memory_space<semaphore_mem>> -> memref<1x!tpu.dma_semaphore, #tpu.memory_space<semaphore_mem>>
      %63 = tpu.memref_squeeze %62 : memref<1x!tpu.dma_semaphore, #tpu.memory_space<semaphore_mem>> -> memref<!tpu.dma_semaphore, #tpu.memory_space<semaphore_mem>>
      tpu.enqueue_dma source(%59 : memref<128xf32, #tpu.memory_space<any>>) target(%61 : memref<128xf32, #tpu.memory_space<vmem>>) target_semaphore(%63 : memref<!tpu.dma_semaphore, #tpu.memory_space<semaphore_mem>>)
      %c1_i32_32 = arith.constant 1 : i32
      %c0_i32_33 = arith.constant 0 : i32
      %64 = tpu.memref_slice %arg5[%57, %c0_i32_33] : memref<32x128xf32, #tpu.memory_space<any>> -> memref<1x128xf32, #tpu.memory_space<any>>
      %65 = tpu.memref_squeeze %64 : memref<1x128xf32, #tpu.memory_space<any>> -> memref<128xf32, #tpu.memory_space<any>>
      %c0_i32_34 = arith.constant 0 : i32
      %66 = tpu.memref_slice %arg11[%47, %c0_i32_34] : memref<16x128xf32, #tpu.memory_space<vmem>> -> memref<1x128xf32, #tpu.memory_space<vmem>>
      %67 = tpu.memref_squeeze %66 : memref<1x128xf32, #tpu.memory_space<vmem>> -> memref<128xf32, #tpu.memory_space<vmem>>
      %68 = tpu.memref_slice %arg12[%c1_i32_32] : memref<2x!tpu.dma_semaphore, #tpu.memory_space<semaphore_mem>> -> memref<1x!tpu.dma_semaphore, #tpu.memory_space<semaphore_mem>>
      %69 = tpu.memref_squeeze %68 : memref<1x!tpu.dma_semaphore, #tpu.memory_space<semaphore_mem>> -> memref<!tpu.dma_semaphore, #tpu.memory_space<semaphore_mem>>
      tpu.enqueue_dma source(%65 : memref<128xf32, #tpu.memory_space<any>>) target(%67 : memref<128xf32, #tpu.memory_space<vmem>>) target_semaphore(%69 : memref<!tpu.dma_semaphore, #tpu.memory_space<semaphore_mem>>)
    }
    %c16_i32_1 = arith.constant 16 : i32
    %c0_i32_2 = arith.constant 0 : i32
    %c16_i32_3 = arith.constant 16 : i32
    %2 = arith.addi %c0_i32_2, %c16_i32_3 : i32
    %c1_i32_4 = arith.constant 1 : i32
    scf.for %arg13 = %c0_i32_2 to %2 step %c1_i32_4  : i32 {
      %c1_i32_25 = arith.constant 1 : i32
      %46 = arith.muli %arg13, %c1_i32_25 : i32
      %c0_i32_26 = arith.constant 0 : i32
      %47 = arith.addi %c0_i32_26, %46 : i32
      %c0_i32_27 = arith.constant 0 : i32
      %c0_i32_28 = arith.constant 0 : i32
      %c0_i32_29 = arith.constant 0 : i32
      %48 = tpu.memref_slice %arg4[%c0_i32_27, %c0_i32_29] : memref<64x128xf32, #tpu.memory_space<any>> -> memref<1x128xf32, #tpu.memory_space<any>>
      %49 = tpu.memref_squeeze %48 : memref<1x128xf32, #tpu.memory_space<any>> -> memref<128xf32, #tpu.memory_space<any>>
      %c0_i32_30 = arith.constant 0 : i32
      %50 = tpu.memref_slice %arg10[%47, %c0_i32_30] : memref<16x128xf32, #tpu.memory_space<vmem>> -> memref<1x128xf32, #tpu.memory_space<vmem>>
      %51 = tpu.memref_squeeze %50 : memref<1x128xf32, #tpu.memory_space<vmem>> -> memref<128xf32, #tpu.memory_space<vmem>>
      %52 = tpu.memref_slice %arg12[%c0_i32_28] : memref<2x!tpu.dma_semaphore, #tpu.memory_space<semaphore_mem>> -> memref<1x!tpu.dma_semaphore, #tpu.memory_space<semaphore_mem>>
      %53 = tpu.memref_squeeze %52 : memref<1x!tpu.dma_semaphore, #tpu.memory_space<semaphore_mem>> -> memref<!tpu.dma_semaphore, #tpu.memory_space<semaphore_mem>>
      tpu.wait_dma2 semaphore(%53 : memref<!tpu.dma_semaphore, #tpu.memory_space<semaphore_mem>>) src(%49 : memref<128xf32, #tpu.memory_space<any>>) dst(%51 : memref<128xf32, #tpu.memory_space<vmem>>)
      %c0_i32_31 = arith.constant 0 : i32
      %c1_i32_32 = arith.constant 1 : i32
      %c0_i32_33 = arith.constant 0 : i32
      %54 = tpu.memref_slice %arg5[%c0_i32_31, %c0_i32_33] : memref<32x128xf32, #tpu.memory_space<any>> -> memref<1x128xf32, #tpu.memory_space<any>>
      %55 = tpu.memref_squeeze %54 : memref<1x128xf32, #tpu.memory_space<any>> -> memref<128xf32, #tpu.memory_space<any>>
      %c0_i32_34 = arith.constant 0 : i32
      %56 = tpu.memref_slice %arg11[%47, %c0_i32_34] : memref<16x128xf32, #tpu.memory_space<vmem>> -> memref<1x128xf32, #tpu.memory_space<vmem>>
      %57 = tpu.memref_squeeze %56 : memref<1x128xf32, #tpu.memory_space<vmem>> -> memref<128xf32, #tpu.memory_space<vmem>>
      %58 = tpu.memref_slice %arg12[%c1_i32_32] : memref<2x!tpu.dma_semaphore, #tpu.memory_space<semaphore_mem>> -> memref<1x!tpu.dma_semaphore, #tpu.memory_space<semaphore_mem>>
      %59 = tpu.memref_squeeze %58 : memref<1x!tpu.dma_semaphore, #tpu.memory_space<semaphore_mem>> -> memref<!tpu.dma_semaphore, #tpu.memory_space<semaphore_mem>>
      tpu.wait_dma2 semaphore(%59 : memref<!tpu.dma_semaphore, #tpu.memory_space<semaphore_mem>>) src(%55 : memref<128xf32, #tpu.memory_space<any>>) dst(%57 : memref<128xf32, #tpu.memory_space<vmem>>)
    }
    %c16_i32_5 = arith.constant 16 : i32
    %c0 = arith.constant 0 : index
    %c0_6 = arith.constant 0 : index
    %3 = vector.load %arg3[%c0, %c0_6] : memref<16x1xi32, #tpu.memory_space<vmem>>, vector<16x1xi32>
    %c0_7 = arith.constant 0 : index
    %c0_8 = arith.constant 0 : index
    %4 = vector.load %arg6[%c0_7, %c0_8] : memref<2x128xf32, #tpu.memory_space<vmem>>, vector<1x128xf32>
    %5 = vector.shape_cast %4 : vector<1x128xf32> to vector<128xf32>
    %6 = vector.shape_cast %5 : vector<128xf32> to vector<1x128xf32>
    %7 = vector.shape_cast %6 : vector<1x128xf32> to vector<1x128xf32>
    %8 = vector.broadcast %7 : vector<1x128xf32> to vector<16x128xf32>
    %c1_i32_9 = arith.constant 1 : i32
    %9 = vector.broadcast %c1_i32_9 : i32 to vector<16x1xi32>
    %10 = arith.cmpi eq, %3, %9 : vector<16x1xi32>
    %c1 = arith.constant 1 : index
    %c0_10 = arith.constant 0 : index
    %11 = vector.load %arg6[%c1, %c0_10] : memref<2x128xf32, #tpu.memory_space<vmem>>, vector<1x128xf32>
    %12 = vector.shape_cast %11 : vector<1x128xf32> to vector<128xf32>
    %13 = vector.shape_cast %12 : vector<128xf32> to vector<1x128xf32>
    %14 = vector.shape_cast %10 : vector<16x1xi1> to vector<16x1xi1>
    %15 = vector.broadcast %14 : vector<16x1xi1> to vector<16x128xi1>
    %16 = vector.shape_cast %13 : vector<1x128xf32> to vector<1x128xf32>
    %17 = vector.broadcast %16 : vector<1x128xf32> to vector<16x128xf32>
    %18 = arith.select %15, %17, %8 : vector<16x128xi1>, vector<16x128xf32>
    %c0_11 = arith.constant 0 : index
    %c0_12 = arith.constant 0 : index
    %19 = vector.load %arg10[%c0_11, %c0_12] : memref<16x128xf32, #tpu.memory_space<vmem>>, vector<16x128xf32>
    %c0_13 = arith.constant 0 : index
    %c0_14 = arith.constant 0 : index
    %20 = vector.load %arg11[%c0_13, %c0_14] : memref<16x128xf32, #tpu.memory_space<vmem>>, vector<16x128xf32>
    %21 = arith.addf %19, %20 : vector<16x128xf32>
    %22 = arith.addf %21, %18 : vector<16x128xf32>
    %cst = arith.constant dense<0.000000e+00> : vector<16xf32>
    %23 = vector.multi_reduction <add>, %22, %cst [1] : vector<16x128xf32> to vector<16xf32>
    %24 = vector.shape_cast %23 : vector<16xf32> to vector<16x1xf32>
    %cst_15 = arith.constant 1.280000e+02 : f32
    %25 = vector.broadcast %cst_15 : f32 to vector<16x1xf32>
    %26 = arith.divf %24, %25 : vector<16x1xf32>
    %27 = vector.broadcast %26 : vector<16x1xf32> to vector<16x128xf32>
    %28 = arith.subf %22, %27 : vector<16x128xf32>
    %29 = arith.mulf %28, %28 : vector<16x128xf32>
    %cst_16 = arith.constant dense<0.000000e+00> : vector<16xf32>
    %30 = vector.multi_reduction <add>, %29, %cst_16 [1] : vector<16x128xf32> to vector<16xf32>
    %31 = vector.shape_cast %30 : vector<16xf32> to vector<16x1xf32>
    %cst_17 = arith.constant 1.280000e+02 : f32
    %32 = vector.broadcast %cst_17 : f32 to vector<16x1xf32>
    %33 = arith.divf %31, %32 : vector<16x1xf32>
    %cst_18 = arith.constant 9.99999996E-13 : f32
    %34 = vector.broadcast %cst_18 : f32 to vector<16x1xf32>
    %35 = arith.addf %33, %34 : vector<16x1xf32>
    %36 = math.rsqrt %35 : vector<16x1xf32>
    %37 = vector.broadcast %36 : vector<16x1xf32> to vector<16x128xf32>
    %38 = arith.mulf %28, %37 : vector<16x128xf32>
    %c0_19 = arith.constant 0 : index
    %c0_20 = arith.constant 0 : index
    %39 = vector.load %arg7[%c0_19, %c0_20] : memref<1x128xf32, #tpu.memory_space<vmem>>, vector<1x128xf32>
    %40 = vector.broadcast %39 : vector<1x128xf32> to vector<16x128xf32>
    %41 = arith.mulf %38, %40 : vector<16x128xf32>
    %c0_21 = arith.constant 0 : index
    %c0_22 = arith.constant 0 : index
    %42 = vector.load %arg8[%c0_21, %c0_22] : memref<1x128xf32, #tpu.memory_space<vmem>>, vector<1x128xf32>
    %43 = vector.broadcast %42 : vector<1x128xf32> to vector<16x128xf32>
    %44 = arith.addf %41, %43 : vector<16x128xf32>
    %c0_23 = arith.constant 0 : index
    %c0_24 = arith.constant 0 : index
    %45 = vector.load %arg9[%c0_23, %c0_24] : memref<16x128xf32, #tpu.memory_space<vmem>>, vector<16x128xf32>
    tpu.vector_store %arg9[%c0_23, %c0_24], %44 {strides = array<i32>} : memref<16x128xf32, #tpu.memory_space<vmem>>, vector<16x128xf32>,
    return
  }
  func.func @transform_0(%arg0: i32, %arg1: memref<16xi32, #tpu.memory_space<smem>>, %arg2: memref<16xi32, #tpu.memory_space<smem>>) -> (i32, i32) {
    %c0_i32 = arith.constant 0 : i32
    %c0_i32_0 = arith.constant 0 : i32
    return %arg0, %c0_i32 : i32, i32
  }
  func.func @transform_3(%arg0: i32, %arg1: memref<16xi32, #tpu.memory_space<smem>>, %arg2: memref<16xi32, #tpu.memory_space<smem>>) -> (i32, i32) {
    %c0_i32 = arith.constant 0 : i32
    %c0_i32_0 = arith.constant 0 : i32
    %c0_i32_1 = arith.constant 0 : i32
    return %c0_i32, %c0_i32_0 : i32, i32
  }
  func.func @transform_4(%arg0: i32, %arg1: memref<16xi32, #tpu.memory_space<smem>>, %arg2: memref<16xi32, #tpu.memory_space<smem>>) -> (i32, i32) {
    %c0_i32 = arith.constant 0 : i32
    %c0_i32_0 = arith.constant 0 : i32
    %c0_i32_1 = arith.constant 0 : i32
    return %c0_i32, %c0_i32_0 : i32, i32
  }
  func.func @transform_5(%arg0: i32, %arg1: memref<16xi32, #tpu.memory_space<smem>>, %arg2: memref<16xi32, #tpu.memory_space<smem>>) -> (i32, i32) {
    %c0_i32 = arith.constant 0 : i32
    %c0_i32_0 = arith.constant 0 : i32
    %c0_i32_1 = arith.constant 0 : i32
    return %c0_i32, %c0_i32_0 : i32, i32
  }
  func.func @transform_6(%arg0: i32, %arg1: memref<16xi32, #tpu.memory_space<smem>>, %arg2: memref<16xi32, #tpu.memory_space<smem>>) -> (i32, i32) {
    %c0_i32 = arith.constant 0 : i32
    %c0_i32_0 = arith.constant 0 : i32
    return %arg0, %c0_i32 : i32, i32
  }
}

</mosaic_0001>

<llo_original>
// kernel: tpu_custom_call.1
$region0: #{tpu_custom_call.1}
  #allocation0 [shape = 'u32[]', space=smem, size = 0x4, offset = 0x4, fixed_abs, tag = 'smem constant byte address 0x4 - core index']
  #allocation1 [shape = 'u32[144,128]{1,0:T(1,128)}', space=vmem, size = 0x12000, scoped, tag = 'internal scratch']
  #allocation2 [shape = 'f32[16,128]{1,0:T(8,128)}', space=vmem, size = 0x2000, scoped, tag = 'scratch operand']
  #allocation3 [shape = 'f32[16,128]{1,0:T(8,128)}', space=vmem, size = 0x2000, scoped, tag = 'scratch operand']
  #allocation4 [shape = 's32[2]{0}', space=sflag, size = 0x8, scoped, tag = 'scratch operand']
  #allocation5 [shape = 's32[1]{0}', space=sflag, size = 0x4, scoped, tag = 'scoped memory for tpu_custom_call.1']
  #allocation6 [shape = 'u8[512]{0}', space=smem, size = 0x200, scoped, tag = 'prefetched SMEM operand 0']
  #allocation7 [shape = 'u8[512]{0}', space=smem, size = 0x200, scoped, tag = 'prefetched SMEM operand 1']
  #allocation10 [shape = 's32[]', space=sflag, size = 0x4, offset = 0, fixed_abs, tag = 'sflag constant byte address 0x0 - dummy sync flag']
  #allocation11 [shape = 's32[]', space=sflag, size = 0x4, offset = 0, fixed_abs, tag = 'sflag constant byte address 0x0 - dummy sync flag']
  #allocation12 [shape = 'u32[]', space=smem, size = 0x4, offset = 0x44, fixed_abs, tag = 'smem constant byte address 0x44 - assertion arg 0']
  #allocation13 [shape = 'u32[]', space=smem, size = 0x4, offset = 0x48, fixed_abs, tag = 'smem constant byte address 0x48 - assertion arg 1']
  #allocation14 [shape = 's32[]', space=sflag, size = 0x4, offset = 0, fixed_abs, tag = 'sflag constant byte address 0x0 - dummy sync flag']
  %s0 = inlined_call_operand.hbm [shape: s32[16], index: 0, kind: input, shape index: {}]
  %s1 = inlined_call_operand.hbm [shape: s32[16], index: 1, kind: input, shape index: {}]
  %s2 = inlined_call_operand.vmem [shape: s32[16,1], index: 2, kind: input, shape index: {}]
  %s3 = inlined_call_operand.hbm [shape: f32[64,128], index: 3, kind: input, shape index: {}]
  %s4 = inlined_call_operand.vmem [shape: f32[32,128], index: 4, kind: input, shape index: {}]
  %s5 = inlined_call_operand.vmem [shape: f32[2,128], index: 5, kind: input, shape index: {}]
  %s6 = inlined_call_operand.vmem [shape: f32[1,128], index: 6, kind: input, shape index: {}]
  %s7 = inlined_call_operand.vmem [shape: f32[1,128], index: 7, kind: input, shape index: {}]
  %s8 = inlined_call_operand.hbm [shape: f32[16,128], index: 8, kind: output, shape index: {}]
  %s9 = sld [smem:[#allocation0]]
  $region74: #{tpu_custom_call.1} parent=0
    _
  %s11 = ssub.s32 1, %s9
  %s12 = scalar_select 0, %s11, %s9
  %14 = dma.hbm_to_smem %s0, 16, [#allocation6], [#allocation5]
  %16 = dma.hbm_to_smem %s1, 16, [#allocation7], [#allocation5]
  %17 = dma.done [#allocation5], 32
  %18 = sfence
  $region1: #{tpu_custom_call.1} parent=0
    #allocation8 [shape = 'u8[8192]{0}', space=vmem, size = 0x2000, scoped, tag = 'output window, operand 0, single buffered']
    #allocation9 [shape = 's32[1]{0}', space=sflag, size = 0x4, scoped, tag = 'scoped memory for tpu_custom_call.1']
    %19 = vsyncpa [#allocation9], 0
    // Predicated region
    $region2: #{tpu_custom_call.1} parent=1 // pred_check
      _
    $region3: #{tpu_custom_call.1} parent=1 // pred_check_branch
      %21 = sbr.rel (0) target = $region5
    $region4: #{tpu_custom_call.1} parent=1 // pred_region
      _
    $region5: #{tpu_custom_call.1} parent=1 // pred_fallthru
      _
    // Predicated region
    $region6: #{tpu_custom_call.1} parent=1 // pred_check
      _
    $region7: #{tpu_custom_call.1} parent=1 // pred_check_branch
      %23 = sbr.rel (0) target = $region9
    $region8: #{tpu_custom_call.1} parent=1 // pred_region
      _
    $region9: #{tpu_custom_call.1} parent=1 // pred_fallthru
      _
    // Predicated region
    $region10: #{tpu_custom_call.1} parent=1 // pred_check
      _
    $region11: #{tpu_custom_call.1} parent=1 // pred_check_branch
      %25 = sbr.rel (0) target = $region13
    $region12: #{tpu_custom_call.1} parent=1 // pred_region
      _
    $region13: #{tpu_custom_call.1} parent=1 // pred_fallthru
      _
    // Predicated region
    $region14: #{tpu_custom_call.1} parent=1 // pred_check
      _
    $region15: #{tpu_custom_call.1} parent=1 // pred_check_branch
      %27 = sbr.rel (0) target = $region17
    $region16: #{tpu_custom_call.1} parent=1 // pred_region
      _
    $region17: #{tpu_custom_call.1} parent=1 // pred_fallthru
      _
    %s28 = smul.u32 0, 16
    loop: start=0, step=1, limit=16
    $region18: #{tpu_custom_call.1} parent=1 // loop_pre_header
      _
    $region19: #{tpu_custom_call.1} parent=1 // loop_header
      %s30 = sphi 0, %s34
      %p31 = scmp.ge.s32.totalorder %s30, 16
    $region20: #{tpu_custom_call.1} parent=1 // loop_header_branch
      %33 = sbr.rel (%p31) target = $region24
    $region21: #{tpu_custom_call.1} parent=1 // loop_body
      %s35 = sadd.s32 %s28, %s30
      %s36 = sld [smem:[#allocation6 + %s35]]
      %p37 = scmp.gt.s32.totalorder %s36, 0
      %s38 = scalar_select %p37, %s36, 0
      %p39 = scmp.lt.s32.totalorder %s38, 63
      %s40 = scalar_select %p39, %s38, 63
      %s41 = sld [smem:[#allocation7 + %s35]]
      %p42 = scmp.gt.s32.totalorder %s41, 0
      %s43 = scalar_select %p42, %s41, 0
      %p44 = scmp.lt.s32.totalorder %s43, 31
      %s45 = scalar_select %p44, %s43, 31
      %s46 = smul.addr %s40, 16
      %s47 = scalar_lea.hbm %s3, %s46
      %s48 = scalar_lea.vmem [#allocation2], %s30
      // Predicated region
      $region25: #{tpu_custom_call.1} parent=21 // pred_check
        _
      $region26: #{tpu_custom_call.1} parent=21 // pred_check_branch
        %50 = sbr.rel target = $region28
      $region27: #{tpu_custom_call.1} parent=21 // pred_region
        %51 = sst [smem:[#allocation12]] [#allocation11]
        %52 = sst [smem:[#allocation13]] [#allocation10]
      $region28: #{tpu_custom_call.1} parent=21 // pred_fallthru
        _
      %54 = shalt.err (0)
      %s56 = sshll.u32 %s48, 4
      %s57 = int_to_ptr.vmem [resolvable:$true] %s56
      %59 = dma.hbm_to_vmem [thread:$0]  %s47, 16, %s57, [#allocation4]
      %s60 = scalar_lea.vmem %s4, %s45
      %s61 = scalar_lea.vmem [#allocation3], %s30
      %s62 = scalar_lea.sflag [#allocation4], 1
      %p64 = scmp.lt.u32.totalorder 1, 8
      %p65 = pneg %p64
      // Predicated region
      $region29: #{tpu_custom_call.1} parent=21 // pred_check
        _
      $region30: #{tpu_custom_call.1} parent=21 // pred_check_branch
        %67 = sbr.rel (%p64) target = $region32
      $region31: #{tpu_custom_call.1} parent=21 // pred_region
        %s82 = sand.u32 1, 7
        %p83 = scmp.eq.s32.totalorder %s82, 0
        %p84 = pneg %p83
        // Predicated region
        $region44: #{tpu_custom_call.1} parent=31 // pred_check
          _
        $region45: #{tpu_custom_call.1} parent=31 // pred_check_branch
          %86 = sbr.rel (%p83) target = $region47
        $region46: #{tpu_custom_call.1} parent=31 // pred_region
          %s87 = sand.u32 1, 7
          %s88 = ssub.s32 1, %s87
          %s89 = scalar_lea.vmem %s60, %s88
          %s90 = ssub.s32 1, %s87
          %s91 = scalar_lea.vmem %s61, %s90 [#allocation3]
          %s92 = sshllo.u32 0, %s87
          loop: start=0, step=1, limit=1
          $region48: #{tpu_custom_call.1} parent=46 // loop_pre_header
            _
          $region49: #{tpu_custom_call.1} parent=46 // loop_header
            %s94 = sphi 0, %s98
            %p95 = scmp.ge.s32.totalorder %s94, 1
            %s99 = sphi %s89, %s89
            %s100 = sphi %s91, %s91
          $region50: #{tpu_custom_call.1} parent=46 // loop_header_branch
            %97 = sbr.rel (%p95) target = $region54
          $region51: #{tpu_custom_call.1} parent=46 // loop_body
            %v101 = vld [vmem:[%s99] sm:%s92]
            %102 = vst [vmem:[%s100] sm:%s92] %v101
          $region52: #{tpu_custom_call.1} parent=46 // loop_footer
            %s98 = sadd.s32 1, %s94
          $region53: #{tpu_custom_call.1} parent=46 // loop_footer_branch
            %93 = sbr.rel target = $region49
          $region54: #{tpu_custom_call.1} parent=46 // loop_exit
            _
        $region47: #{tpu_custom_call.1} parent=31 // pred_fallthru
          _
      $region32: #{tpu_custom_call.1} parent=21 // pred_fallthru
        _
      // Predicated region
      $region33: #{tpu_custom_call.1} parent=21 // pred_check
        %p68 = pneg %p64
      $region34: #{tpu_custom_call.1} parent=21 // pred_check_branch
        %70 = sbr.rel (%p68) target = $region36
      $region35: #{tpu_custom_call.1} parent=21 // pred_region
        %s71 = sshllo.u32 0, 1
        loop: start=0, step=1, limit=1
        $region37: #{tpu_custom_call.1} parent=35 // loop_pre_header
          _
        $region38: #{tpu_custom_call.1} parent=35 // loop_header
          %s73 = sphi 0, %s77
          %p74 = scmp.ge.s32.totalorder %s73, 1
          %s78 = sphi %s60, %s60
          %s79 = sphi %s61, %s61
        $region39: #{tpu_custom_call.1} parent=35 // loop_header_branch
          %76 = sbr.rel (%p74) target = $region43
        $region40: #{tpu_custom_call.1} parent=35 // loop_body
          %v80 = vld [vmem:[%s78] sm:%s71]
          %81 = vst [vmem:[%s79] sm:%s71] %v80
        $region41: #{tpu_custom_call.1} parent=35 // loop_footer
          %s77 = sadd.s32 1, %s73
        $region42: #{tpu_custom_call.1} parent=35 // loop_footer_branch
          %72 = sbr.rel target = $region38
        $region43: #{tpu_custom_call.1} parent=35 // loop_exit
          _
      $region36: #{tpu_custom_call.1} parent=21 // pred_fallthru
        _
      // Predicated region
      $region55: #{tpu_custom_call.1} parent=21 // pred_check
        _
      $region56: #{tpu_custom_call.1} parent=21 // pred_check_branch
        %105 = sbr.rel (0) target = $region58
      $region57: #{tpu_custom_call.1} parent=21 // pred_region
        %106 = vsyncadd %s62, 16
      $region58: #{tpu_custom_call.1} parent=21 // pred_fallthru
        _
    $region22: #{tpu_custom_call.1} parent=1 // loop_footer
      %s34 = sadd.s32 1, %s30
    $region23: #{tpu_custom_call.1} parent=1 // loop_footer_branch
      %29 = sbr.rel target = $region19
    $region24: #{tpu_custom_call.1} parent=1 // loop_exit
      _
    loop: start=0, step=1, limit=16
    $region59: #{tpu_custom_call.1} parent=1 // loop_pre_header
      _
    $region60: #{tpu_custom_call.1} parent=1 // loop_header
      %s108 = sphi 0, %s112
      %p109 = scmp.ge.s32.totalorder %s108, 16
    $region61: #{tpu_custom_call.1} parent=1 // loop_header_branch
      %111 = sbr.rel (%p109) target = $region65
    $region62: #{tpu_custom_call.1} parent=1 // loop_body
      %114 = dma.done [#allocation4], 16
      %s115 = scalar_lea.sflag [#allocation4], 1
      %117 = dma.done %s115, 16
    $region63: #{tpu_custom_call.1} parent=1 // loop_footer
      %s112 = sadd.s32 1, %s108
    $region64: #{tpu_custom_call.1} parent=1 // loop_footer_branch
      %107 = sbr.rel target = $region60
    $region65: #{tpu_custom_call.1} parent=1 // loop_exit
      _
    %v118 = vld [vmem:[%s2] sm:$0xff]
    %v119 = vld [vmem:[%s2 + $0x8] sm:$0xff]
    %v120 = vld [vmem:[%s5] sm:$0x1]
    %v121 = vlaneseq
    %v122 = vshrl.u32 %v121, 7
    %v123 = vsub.s32 0, %v122
    %v124 = vrot.slane %v120, %v123
    %vm125 = vcmp.eq.s32.totalorder %v118, 1
    %vm126 = vcmp.eq.s32.totalorder %v119, 1
    %v127 = vld [vmem:[%s5 + $0x1] sm:$0x1]
    %v128 = vsel %vm125, 1, 0
    %v129 = vsel %vm126, 1, 0
    %130 = vset.pattern.permute.xlu0 0
    %131 = vperm.xlu0 %130, %v128
    %v132 = vpop.permute.xlu0 %131
    %133 = vset.pattern.permute.xlu0 0
    %134 = vperm.xlu0 %133, %v129
    %v135 = vpop.permute.xlu0 %134
    %vm136 = vcmp.eq.s32.totalorder %v132, 1
    %vm137 = vcmp.eq.s32.totalorder %v135, 1
    %v138 = vlaneseq
    %v139 = vshrl.u32 %v138, 7
    %v140 = vsub.s32 0, %v139
    %v141 = vrot.slane %v127, %v140
    %v142 = vsel %vm136, %v141, %v124
    %v143 = vsel %vm137, %v141, %v124
    %v144 = vld [vmem:[#allocation2] sm:$0xff]
    %v145 = vld [vmem:[#allocation2 + $0x8] sm:$0xff]
    %v146 = vld [vmem:[#allocation3] sm:$0xff]
    %v147 = vld [vmem:[#allocation3 + $0x8] sm:$0xff]
    %v148 = vadd.f32 %v144, %v146
    %v149 = vadd.f32 %v145, %v147
    %v150 = vadd.f32 %v148, %v142
    %v151 = vadd.f32 %v149, %v143
    %152 = vadd.xlane.f32.xlu0 %v150
    %v153 = vpop.xlane.xlu0 %152
    %154 = vadd.xlane.f32.xlu0 %v151
    %v155 = vpop.xlane.xlu0 %154
    %v156 = vrcp.pop 128.0
    %v157 = vmul.f32 %v153, %v156
    %v158 = vmul.f32 %v155, %v156
    %v159 = vsub.f32 %v150, %v157
    %v160 = vsub.f32 %v151, %v158
    %v161 = vmul.f32 %v159, %v159
    %v162 = vmul.f32 %v160, %v160
    %163 = vadd.xlane.f32.xlu0 %v161
    %v164 = vpop.xlane.xlu0 %163
    %165 = vadd.xlane.f32.xlu0 %v162
    %v166 = vpop.xlane.xlu0 %165
    %v167 = vmul.f32 %v164, %v156
    %v168 = vmul.f32 %v166, %v156
    %v169 = vadd.f32 %v167, 1e-12
    %v170 = vadd.f32 %v168, 1e-12
    %v171 = vrsqrt.pop %v169
    %v172 = vrsqrt.pop %v170
    %v173 = vmul.f32 %v159, %v171
    %v174 = vmul.f32 %v160, %v172
    %v175 = vld [vmem:[%s6] sm:$0x1]
    %v177 = vlaneseq
    %v178 = vshrl.u32 %v177, 7
    %v179 = vsub.s32 0, %v178
    %v180 = vrot.slane %v175, %v179
    %v182 = vmul.f32 %v173, %v180
    %v183 = vmul.f32 %v174, %v180
    %v184 = vld [vmem:[%s7] sm:$0x1]
    %v186 = vlaneseq
    %v187 = vshrl.u32 %v186, 7
    %v188 = vsub.s32 0, %v187
    %v189 = vrot.slane %v184, %v188
    %v191 = vadd.f32 %v182, %v189
    %v192 = vadd.f32 %v183, %v189
    %193 = vst [vmem:[#allocation8] sm:$0xff] %v191
    %194 = vst [vmem:[#allocation8 + $0x8] sm:$0xff] %v192
    // Predicated region
    $region66: #{tpu_custom_call.1} parent=1 // pred_check
      _
    $region67: #{tpu_custom_call.1} parent=1 // pred_check_branch
      %196 = sbr.rel (0) target = $region69
    $region68: #{tpu_custom_call.1} parent=1 // pred_region
      %s198 = ssub.s32 256, 256
      %199 = vsyncadd [#allocation9], %s198
      %s200 = sshll.u32 [#allocation8], 4
      %s201 = int_to_ptr.vmem [resolvable:$true] %s200
      %206 = dma.vmem_to_hbm [thread:$0]  %s201, 256, %s8, [#allocation9], 128, 128, 8
    $region69: #{tpu_custom_call.1} parent=1 // pred_fallthru
      _
    // Predicated region
    $region70: #{tpu_custom_call.1} parent=1 // pred_check
      _
    $region71: #{tpu_custom_call.1} parent=1 // pred_check_branch
      %208 = sbr.rel (0) target = $region73
    $region72: #{tpu_custom_call.1} parent=1 // pred_region
      %209 = dma.done [#allocation9], 256
    $region73: #{tpu_custom_call.1} parent=1 // pred_fallthru
      _
    %210 = vsyncpa [#allocation9], 1
  %211 = vsyncmov [#allocation4]
  %s212 = vpop.sfrf %211
  %p213 = scmp.eq.s32.totalorder %s212, 0
  %p214 = pneg %p213
  %216 = shalt.err (%p214)
  %s217 = scalar_lea.sflag [#allocation4], 1
  %218 = vsyncmov %s217
  %s219 = vpop.sfrf %218
  %p220 = scmp.eq.s32.totalorder %s219, 0
  %p221 = pneg %p220
  %223 = shalt.err (%p221)

</llo_original>
